<compile_context>
chip_gen: v6e
topology: v6e:2x2x1
jax: 0.10.0
libtpu: 0.0.40
codegen_flags: <defaults>
</compile_context>

<pallas_src>
import functools

import jax
import jax.numpy as jnp
from jax.experimental import pallas as pl
from jax.experimental.pallas import tpu as pltpu


def _embed_kernel(w_ref, x_ref, o_ref):
    # out_T tile = W (N, K) @ x_T tile (K, TM) -> (N, TM); f32 accumulate on MXU.
    o_ref[...] = jnp.dot(
        w_ref[...], x_ref[...], preferred_element_type=jnp.float32
    ).astype(o_ref.dtype)


def _round_up(x, m):
    return (x + m - 1) // m * m


@functools.partial(jax.jit, static_argnames=("tm",))
def embedding_net_forward(x, weight, *, tm=32768):
    """Pallas equivalent of EmbeddingNet.forward.

    Args:
      x:      (..., node_dim) input, any leading batch dims.
      weight: (embedding_dim, node_dim) — same layout as PyTorch nn.Linear.weight.
      tm:     M-axis tile (lane dimension of the transposed problem),
              clamped/rounded to a multiple of 128.

    Returns:
      (..., embedding_dim)
    """
    node_dim = x.shape[-1]
    embedding_dim = weight.shape[0]
    lead_shape = x.shape[:-1]

    # Matmul in the input dtype (MXU-friendly), single consistent operand dtype.
    weight = weight.astype(x.dtype)

    # Flatten leading dims, then transpose so the big M axis is lane-dense.
    x2d = x.reshape(-1, node_dim)          # (M, K)
    m = x2d.shape[0]

    tm = max(128, min(tm, _round_up(m, 128)))   # don't over-tile tiny problems
    m_pad = _round_up(m, tm)

    x_t = x2d.T                            # (K, M)   — layout plumbing in XLA
    if m_pad != m:
        x_t = jnp.pad(x_t, ((0, 0), (0, m_pad - m)))

    grid = (m_pad // tm,)
    itemsize = jnp.dtype(x.dtype).itemsize

    out_t = pl.pallas_call(
        _embed_kernel,
        out_shape=jax.ShapeDtypeStruct((embedding_dim, m_pad), x.dtype),
        grid_spec=pl.GridSpec(
            grid=grid,
            in_specs=[
                # Weight: full (N, K) block, constant index_map -> VMEM-resident.
                pl.BlockSpec((embedding_dim, node_dim), lambda i: (0, 0)),
                # x_T: (K, TM) lane-dense tile streamed along M.
                pl.BlockSpec((node_dim, tm), lambda i: (0, i)),
            ],
            # out_T: (N, TM) lane-dense tile -> unmasked full-lane stores.
            out_specs=pl.BlockSpec((embedding_dim, tm), lambda i: (0, i)),
        ),
        compiler_params=pltpu.CompilerParams(
            dimension_semantics=("parallel",),
        ),
        cost_estimate=pl.CostEstimate(
            flops=2 * m_pad * node_dim * embedding_dim,
            transcendentals=0,
            bytes_accessed=itemsize
            * (m_pad * node_dim + node_dim * embedding_dim + m_pad * embedding_dim),
        ),
    )(weight, x_t)

    out2d = out_t[:, :m].T                 # back to (M, N)
    return out2d.reshape(*lead_shape, embedding_dim)


if __name__ == "__main__":
    # Small shapes consistent with the module: batch=2, seq=8 nodes,
    # node_dim=4, embedding_dim=32.
    node_dim = 4
    embedding_dim = 32
    batch, seq = 2, 8

    key = jax.random.PRNGKey(0)
    kx, kw = jax.random.split(key)

    x = jax.random.normal(kx, (batch, seq, node_dim), dtype=jnp.float32)

    # Deterministic init matching nn.Linear default: U(-1/sqrt(in), 1/sqrt(in)).
    bound = 1.0 / (node_dim ** 0.5)
    weight = jax.random.uniform(
        kw, (embedding_dim, node_dim), dtype=jnp.float32,
        minval=-bound, maxval=bound,
    )

    out = embedding_net_forward(x, weight)
    out = jax.block_until_ready(out)

    # Reference check against plain JAX (same semantics as PyTorch x @ W.T).
    ref = x @ weight.T
    assert out.shape == (batch, seq, embedding_dim)
    assert jnp.allclose(out, ref, atol=1e-5, rtol=1e-5)

    print("KERNEL_OK")
</pallas_src>

<mosaic_0001>
module attributes {stable_mosaic.version = 11 : i64} {
  func.func @_embed_kernel(%arg0: i32, %arg1: memref<32x4xf32, #tpu.memory_space<vmem>>, %arg2: memref<4x128xf32, #tpu.memory_space<vmem>>, %arg3: memref<32x128xf32, #tpu.memory_space<vmem>>) attributes {dimension_semantics = [#tpu.dimension_semantics<parallel>], iteration_bounds = array<i64: 1>, scalar_prefetch = 0 : i64, scratch_operands = 0 : i64, tpu.core_type = #tpu.core_type<tc>, window_params = [{pipeline_mode = #tpu.pipeline_mode<synchronous>, transform_indices = @transform_0, window_bounds = array<i64: 32, 4>}, {transform_indices = @transform_1, window_bounds = array<i64: 4, 128>}, {transform_indices = @transform_2, window_bounds = array<i64: 32, 128>}]} {
    %c0 = arith.constant 0 : index
    %c0_0 = arith.constant 0 : index
    %0 = vector.load %arg1[%c0, %c0_0] : memref<32x4xf32, #tpu.memory_space<vmem>>, vector<32x4xf32>
    %c0_1 = arith.constant 0 : index
    %c0_2 = arith.constant 0 : index
    %1 = vector.load %arg2[%c0_1, %c0_2] : memref<4x128xf32, #tpu.memory_space<vmem>>, vector<4x128xf32>
    %cst = arith.constant dense<0.000000e+00> : vector<32x128xf32>
    %2 = tpu.matmul %0, %1, %cst {dimension_numbers = #tpu.dot_dimension_numbers<[1], [0], [0], [1], [0, 0, 1, 1], [], []>} : vector<32x4xf32>, vector<4x128xf32>, vector<32x128xf32> -> vector<32x128xf32>
    %c0_3 = arith.constant 0 : index
    %c0_4 = arith.constant 0 : index
    %3 = vector.load %arg3[%c0_3, %c0_4] : memref<32x128xf32, #tpu.memory_space<vmem>>, vector<32x128xf32>
    tpu.vector_store %arg3[%c0_3, %c0_4], %2 {strides = array<i32>} : memref<32x128xf32, #tpu.memory_space<vmem>>, vector<32x128xf32>,
    return
  }
  func.func @transform_0(%arg0: i32) -> (i32, i32) {
    %c0_i32 = arith.constant 0 : i32
    %c0_i32_0 = arith.constant 0 : i32
    %c0_i32_1 = arith.constant 0 : i32
    return %c0_i32, %c0_i32_0 : i32, i32
  }
  func.func @transform_1(%arg0: i32) -> (i32, i32) {
    %c0_i32 = arith.constant 0 : i32
    %c0_i32_0 = arith.constant 0 : i32
    return %c0_i32, %arg0 : i32, i32
  }
  func.func @transform_2(%arg0: i32) -> (i32, i32) {
    %c0_i32 = arith.constant 0 : i32
    %c0_i32_0 = arith.constant 0 : i32
    return %c0_i32, %arg0 : i32, i32
  }
}

</mosaic_0001>

<llo_original>
// kernel: embedding_net_forward.1
$region0: #{embedding_net_forward.1}
  #allocation0 [shape = 'u32[]', space=smem, size = 0x4, offset = 0x4, fixed_abs, tag = 'smem constant byte address 0x4 - core index']
  #allocation1 [shape = 'u32[144,128]{1,0:T(1,128)}', space=vmem, size = 0x12000, scoped, tag = 'internal scratch']
  %s0 = inlined_call_operand.vmem [shape: f32[32,4], index: 0, kind: input, shape index: {}]
  %s1 = inlined_call_operand.vmem [shape: f32[4,128], index: 1, kind: input, shape index: {}]
  %s2 = inlined_call_operand.vmem [shape: f32[32,128], index: 2, kind: output, shape index: {}]
  %s3 = sld [smem:[#allocation0]]
  $region18: #{embedding_net_forward.1} parent=0
    _
  %s5 = ssub.s32 1, %s3
  %s6 = scalar_select 0, %s5, %s3
  // Predicated region
  $region2: #{embedding_net_forward.1} parent=0 // pred_check
    _
  $region3: #{embedding_net_forward.1} parent=0 // pred_check_branch
    %8 = sbr.rel (0) target = $region5
  $region4: #{embedding_net_forward.1} parent=0 // pred_region
    _
  $region5: #{embedding_net_forward.1} parent=0 // pred_fallthru
    _
  // Predicated region
  $region6: #{embedding_net_forward.1} parent=0 // pred_check
    _
  $region7: #{embedding_net_forward.1} parent=0 // pred_check_branch
    %10 = sbr.rel (0) target = $region9
  $region8: #{embedding_net_forward.1} parent=0 // pred_region
    _
  $region9: #{embedding_net_forward.1} parent=0 // pred_fallthru
    _
  %v11 = vld [vmem:[%s0] sm:$0xff]
  %v12 = vld [vmem:[%s0 + $0x8] sm:$0xff]
  %v13 = vld [vmem:[%s0 + $0x10] sm:$0xff]
  %v14 = vld [vmem:[%s0 + $0x18] sm:$0xff]
  %v15 = vld [vmem:[%s1] sm:$0xf]
  %vm16 = vcmask 31744
  %v18 = vsel %vm16, %v11, 0
  %v21 = vsel %vm16, %v12, 0
  %v24 = vsel %vm16, %v13, 0
  %v27 = vsel %vm16, %v14, 0
  %vm29 = vcmask 1043456
  %v31 = vsel %vm29, %v15, 0
  %33 = vmatprep.subr.mxu0 0.0
  %34 = vmatpush1.msra.mxu0 0.0
  %35 = vmatprep.subr.mxu0 0.0
  %36 = vmatpush1.msra.mxu0 0.0
  %37 = vmatprep.subr.mxu0 0.0
  %38 = vmatpush1.msra.mxu0 0.0
  %39 = vmatprep.subr.mxu0 0.0
  %40 = vmatpush1.msra.mxu0 0.0
  %41 = vmatprep.subr.mxu0 0.0
  %42 = vmatpush1.msra.mxu0 0.0
  %43 = vmatprep.subr.mxu0 0.0
  %44 = vmatpush1.msra.mxu0 0.0
  %45 = vmatprep.subr.mxu0 0.0
  %46 = vmatpush1.msra.mxu0 0.0
  %47 = vmatprep.subr.mxu0 0.0
  %48 = vmatpush1.msra.mxu0 0.0
  %49 = vmatprep.subr.mxu0 0.0
  %50 = vmatpush1.msra.mxu0 0.0
  %51 = vmatprep.subr.mxu0 0.0
  %52 = vmatpush1.msra.mxu0 0.0
  %53 = vmatprep.subr.mxu0 0.0
  %54 = vmatpush1.msra.mxu0 0.0
  %55 = vmatprep.subr.mxu0 0.0
  %56 = vmatpush1.msra.mxu0 0.0
  %57 = vmatprep.subr.mxu0 0.0
  %58 = vmatpush1.msra.mxu0 0.0
  %59 = vmatprep.subr.mxu0 0.0
  %60 = vmatpush1.msra.mxu0 0.0
  %61 = vmatprep.subr.mxu0 0.0
  %62 = vmatpush1.msra.mxu0 0.0
  %63 = vmatprep.subr.mxu0 0.0
  %64 = vmatpush1.msra.mxu0 %v31
  %65 = vmatprep.subr.mxu0 0.0
  %66 = vmatpush2.msra.mxu0 0.0
  %67 = vmatprep.subr.mxu0 0.0
  %68 = vmatpush2.msra.mxu0 0.0
  %69 = vmatprep.subr.mxu0 0.0
  %70 = vmatpush2.msra.mxu0 0.0
  %71 = vmatprep.subr.mxu0 0.0
  %72 = vmatpush2.msra.mxu0 0.0
  %73 = vmatprep.subr.mxu0 0.0
  %74 = vmatpush2.msra.mxu0 0.0
  %75 = vmatprep.subr.mxu0 0.0
  %76 = vmatpush2.msra.mxu0 0.0
  %77 = vmatprep.subr.mxu0 0.0
  %78 = vmatpush2.msra.mxu0 0.0
  %79 = vmatprep.subr.mxu0 0.0
  %80 = vmatpush2.msra.mxu0 0.0
  %81 = vmatprep.subr.mxu0 0.0
  %82 = vmatpush2.msra.mxu0 0.0
  %83 = vmatprep.subr.mxu0 0.0
  %84 = vmatpush2.msra.mxu0 0.0
  %85 = vmatprep.subr.mxu0 0.0
  %86 = vmatpush2.msra.mxu0 0.0
  %87 = vmatprep.subr.mxu0 0.0
  %88 = vmatpush2.msra.mxu0 0.0
  %89 = vmatprep.subr.mxu0 0.0
  %90 = vmatpush2.msra.mxu0 0.0
  %91 = vmatprep.subr.mxu0 0.0
  %92 = vmatpush2.msra.mxu0 0.0
  %93 = vmatprep.subr.mxu0 0.0
  %94 = vmatpush2.msra.mxu0 0.0
  %95 = vmatprep.subr.mxu0 0.0
  %96 = vmatpush2.msra.mxu0 0.0
  %97 = vmatprep.mubr.f32.mxu0 0.0
  %98 = vmatmul.mubr.f32.gmra.mxu0 %v18
  %v99 = vpop.f32.mrf.mxu0
  %v100 = vadd.f32 0.0, %v99
  %v101 = vpop.f32.mrf.mxu0
  %102 = vmatprep.mubr.f32.mxu0 0.0
  %103 = vmatmul.mubr.f32.gmra.mxu0 %v21
  %v104 = vpop.f32.mrf.mxu0
  %v105 = vadd.f32 0.0, %v104
  %v106 = vpop.f32.mrf.mxu0
  %107 = vmatprep.mubr.f32.mxu0 0.0
  %108 = vmatmul.mubr.f32.gmra.mxu0 %v24
  %v109 = vpop.f32.mrf.mxu0
  %v110 = vadd.f32 0.0, %v109
  %v111 = vpop.f32.mrf.mxu0
  %112 = vmatprep.mubr.f32.mxu0 0.0
  %113 = vmatmul.mubr.f32.gmra.mxu0 %v27
  %v114 = vpop.f32.mrf.mxu0
  %v115 = vadd.f32 0.0, %v114
  %v116 = vpop.f32.mrf.mxu0
  %117 = vdwg.mxu0
  %118 = vst [vmem:[%s2] sm:$0xff] %v100
  %119 = vst [vmem:[%s2 + $0x8] sm:$0xff] %v105
  %120 = vst [vmem:[%s2 + $0x10] sm:$0xff] %v110
  %121 = vst [vmem:[%s2 + $0x18] sm:$0xff] %v115
  // Predicated region
  $region10: #{embedding_net_forward.1} parent=0 // pred_check
    _
  $region11: #{embedding_net_forward.1} parent=0 // pred_check_branch
    %123 = sbr.rel (0) target = $region13
  $region12: #{embedding_net_forward.1} parent=0 // pred_region
    _
  $region13: #{embedding_net_forward.1} parent=0 // pred_fallthru
    _
  // Predicated region
  $region14: #{embedding_net_forward.1} parent=0 // pred_check
    _
  $region15: #{embedding_net_forward.1} parent=0 // pred_check_branch
    %125 = sbr.rel (0) target = $region17
  $region16: #{embedding_net_forward.1} parent=0 // pred_region
    _
  $region17: #{embedding_net_forward.1} parent=0 // pred_fallthru
    _

</llo_original>
